<compile_context>
chip_gen: v6e
topology: v6e:2x2x1
jax: 0.10.0
libtpu: 0.0.40
codegen_flags: <defaults>
</compile_context>

<pallas_src>
import jax
import jax.numpy as jnp
from jax.experimental import pallas as pl
from jax.experimental.pallas import tpu as pltpu


# ----------------------------- config (synthetic) -----------------------------
NUM_CLASSES = 4                 # => num_classes + 1 = 5 class auto-encoders
AE_HIDDEN = [16]                # config['ae_hidden']
AE_LATENT = 8                   # config['ae_latent']
GAMMA = 1.0                     # config['gamma']
REDUCTION = -1.0 * GAMMA        # model == 'csgrl'  -> reduction = -gamma
CLIP_LEN = 100.0                # CSGRLClassifier.clip_len

TN_MAX = 4096                   # max lane tile on the pixel axis (sweepable)
LANE = 128                      # vreg lane width


# ------------------------------- Pallas kernel --------------------------------
def _make_csgrl_kernel(n_layers, act_flags, K, C, clip_len):
    """Fused all-class auto-encoder + reconstruction-error kernel.

    Refs (in order): x_ref  -> (C, TN) bf16  or (1, C, TN) bf16,
                     n_layers packed weight refs (bf16, stacked / block-diag),
                     sel_ref -> (K, K*C) f32  (channel-sum selector * reduction),
                     out_ref -> (K, TN) f32  or (1, K, TN) f32.
    """

    def kernel(x_ref, *refs):
        wrefs = refs[:n_layers]
        sel_ref = refs[n_layers]
        out_ref = refs[n_layers + 1]

        batched = len(x_ref.shape) == 3            # HW >= 128 regime (batch on grid)
        x = x_ref[0] if batched else x_ref[...]    # (C, TN) bf16

        # Stacked / block-diagonal AE chain: bf16 MXU inputs, f32 accumulation.
        h = x
        for i in range(n_layers):
            h = jnp.dot(wrefs[i][...], h, preferred_element_type=jnp.float32)
            if act_flags[i]:
                h = jnp.tanh(h)                    # f32 EUP (safe on v5e too)
            if i + 1 < n_layers:
                h = h.astype(jnp.bfloat16)         # next matmul input

        # h == rc for all classes, stacked: (K*C, TN) f32.
        tn = h.shape[-1]
        xf = x.astype(jnp.float32)
        diff = h.reshape(K, C, tn) - xf[None, :, :]        # VPU broadcast subtract
        sq = (diff * diff).reshape(K * C, tn)               # f32
        # per-class channel sum, pre-scaled by `reduction`, on the MXU (f32).
        err = jnp.dot(sel_ref[...], sq, preferred_element_type=jnp.float32)
        res = jnp.clip(err, -clip_len, clip_len)             # (K, TN)
        if batched:
            out_ref[0] = res
        else:
            out_ref[...] = res

    return kernel


# ----------------------------- parameter creation ------------------------------
def init_csgrl_params(key, in_channels, hidden, latent, num_aes):
    """Deterministic Conv2d(k=1, bias=False)-style weights for all class AEs,
    stacked along a leading class axis."""
    dims = [in_channels] + list(hidden)
    keys = iter(jax.random.split(key, 4 + 2 * len(hidden)))

    def conv_w(k, out_c, in_c):
        bound = 1.0 / (in_c ** 0.5)   # PyTorch kaiming_uniform(a=sqrt(5)) bound
        return jax.random.uniform(k, (num_aes, out_c, in_c), jnp.float32,
                                  minval=-bound, maxval=bound)

    enc_ws = [conv_w(next(keys), dims[i + 1], dims[i]) for i in range(len(hidden))]
    h_last = dims[-1]
    w_lat = conv_w(next(keys), latent, h_last)
    w_latde = conv_w(next(keys), h_last, latent)
    # decode convs in *applied* order (reversed); activation used iff i != 0
    dec_ws, dec_acts = [], []
    for i in reversed(range(len(hidden))):
        dec_ws.append(conv_w(next(keys), dims[i], dims[i + 1]))
        dec_acts.append(i != 0)
    return enc_ws, w_lat, w_latde, dec_ws, tuple(dec_acts)


# ------------------------------ weight packing ---------------------------------
def _block_diag(blocks):
    rows = sum(b.shape[0] for b in blocks)
    cols = sum(b.shape[1] for b in blocks)
    out = jnp.zeros((rows, cols), jnp.float32)
    r = c = 0
    for b in blocks:
        out = out.at[r:r + b.shape[0], c:c + b.shape[1]].set(b)
        r += b.shape[0]
        c += b.shape[1]
    return out


def _pack_weights(enc_ws, w_lat, w_latde, dec_ws, dec_acts, C, K):
    """Pack per-class AE weights into one stacked/block-diag matmul chain (bf16)."""
    packed, acts = [], []
    if enc_ws:
        h1 = enc_ws[0].shape[1]
        packed.append(enc_ws[0].reshape(K * h1, C))          # shared input -> row-stack
        acts.append(True)
        for w in enc_ws[1:]:
            packed.append(_block_diag([w[k] for k in range(K)]))
            acts.append(True)
        packed.append(_block_diag([w_lat[k] for k in range(K)]))
        acts.append(True)
    else:
        packed.append(w_lat.reshape(K * w_lat.shape[1], C))   # latent conv shares input
        acts.append(True)
    packed.append(_block_diag([w_latde[k] for k in range(K)]))
    acts.append(len(enc_ws) > 0)
    for j, w in enumerate(dec_ws):
        packed.append(_block_diag([w[k] for k in range(K)]))
        acts.append(bool(dec_acts[j]))

    packed = [p.astype(jnp.bfloat16) for p in packed]          # bf16 MXU inputs
    # (K, K*C): per-class channel-sum selector, pre-scaled by `reduction` (kept f32)
    sel = _block_diag([jnp.ones((1, C), jnp.float32)] * K) * REDUCTION
    return packed, tuple(acts), sel


# ------------------------------ pallas_call wrapper ----------------------------
def csgrl_classifier_pallas(x_feat, params):
    """x_feat: (B, C, H, W) features -> logits (B, num_aes, H, W)."""
    enc_ws, w_lat, w_latde, dec_ws, dec_acts = params
    B, C, H, W = x_feat.shape
    HW = H * W
    K = w_lat.shape[0]

    packed, acts, sel = _pack_weights(enc_ws, w_lat, w_latde, dec_ws, dec_acts, C, K)
    kernel = _make_csgrl_kernel(len(packed), acts, K, C, CLIP_LEN)
    consts = list(packed) + [sel]

    lane_dense = HW < LANE   # small feature maps: fold batch into the lane axis
    if lane_dense:
        # one-off tiny transpose so every vector op / store is lane-dense
        xl = (x_feat.reshape(B, C, HW).transpose(1, 0, 2)
              .reshape(C, B * HW).astype(jnp.bfloat16))
        N = B * HW
        TN = min(N, TN_MAX)
        n_tiles = pl.cdiv(N, TN)                 # partial last block if needed
        grid = (n_tiles,)
        in_specs = [pl.BlockSpec((C, TN), lambda n: (0, n))]
        in_specs += [pl.BlockSpec(w.shape, lambda n: (0, 0)) for w in consts]
        out_specs = pl.BlockSpec((K, TN), lambda n: (0, n))
        out_shape = jax.ShapeDtypeStruct((K, N), jnp.float32)
        dims = ("parallel",)
    else:
        # lane axis (HW) already >= 128: free reshape, batch carried by the grid
        xl = x_feat.reshape(B, C, HW).astype(jnp.bfloat16)
        TN = min(HW, TN_MAX)
        n_tiles = pl.cdiv(HW, TN)                # partial last block if needed
        grid = (B, n_tiles)
        in_specs = [pl.BlockSpec((1, C, TN), lambda b, n: (b, 0, n))]
        in_specs += [pl.BlockSpec(w.shape, lambda b, n: (0, 0)) for w in consts]
        out_specs = pl.BlockSpec((1, K, TN), lambda b, n: (b, 0, n))
        out_shape = jax.ShapeDtypeStruct((B, K, HW), jnp.float32)
        dims = ("parallel", "parallel")

    out = pl.pallas_call(
        kernel,
        out_shape=out_shape,
        grid_spec=pltpu.PrefetchScalarGridSpec(
            num_scalar_prefetch=0,
            grid=grid,
            in_specs=in_specs,
            out_specs=out_specs,
        ),
        compiler_params=pltpu.CompilerParams(
            dimension_semantics=dims,
            vmem_limit_bytes=48 * 1024 * 1024),
    )(xl, *consts)

    if lane_dense:
        logits = out.reshape(K, B, HW).transpose(1, 0, 2).reshape(B, K, H, W)
    else:
        logits = out.reshape(B, K, H, W)
    return logits


def csgrl_model_forward(x_feat, params, reqfeature=False, isgen=True):
    """CSGRLModel.forward with isgen=True (backbone skipped; x is the feature
    map). Returns (features, class logits) just like the PyTorch module."""
    assert isgen, "backbone path not implemented (external dependency)"
    if reqfeature:
        return x_feat
    logits = csgrl_classifier_pallas(x_feat, params)
    return x_feat, logits


# ------------------------------- pure-JAX reference ----------------------------
def _reference(x_feat, params):
    enc_ws, w_lat, w_latde, dec_ws, dec_acts = params
    B, C, H, W = x_feat.shape
    xc = x_feat.reshape(B, C, H * W)
    K = w_lat.shape[0]
    outs = []
    for k in range(K):
        h = xc
        for w in enc_ws:
            h = jnp.tanh(jnp.einsum('oc,bcn->bon', w[k], h))
        lt = jnp.tanh(jnp.einsum('oc,bcn->bon', w_lat[k], h))
        d = jnp.einsum('oc,bcn->bon', w_latde[k], lt)
        if len(enc_ws) > 0:
            d = jnp.tanh(d)
        for j, w in enumerate(dec_ws):
            d = jnp.einsum('oc,bcn->bon', w[k], d)
            if dec_acts[j]:
                d = jnp.tanh(d)
        err = jnp.sum((d - xc) ** 2, axis=1, keepdims=True) * REDUCTION
        outs.append(jnp.clip(err, -CLIP_LEN, CLIP_LEN))
    logits = jnp.concatenate(outs, axis=1)               # (B, K, HW)
    return logits.reshape(B, K, H, W)


# --------------------------------------- main ----------------------------------
if __name__ == "__main__":
    key = jax.random.PRNGKey(0)
    k_x, k_w, k_x2 = jax.random.split(key, 3)

    # small feature-map shape consistent with the module (backbone output):
    B, C, H, W = 2, 32, 8, 8
    x = jax.random.normal(k_x, (B, C, H, W), jnp.float32)
    params = init_csgrl_params(k_w, C, AE_HIDDEN, AE_LATENT, NUM_CLASSES + 1)

    feats, logits = csgrl_model_forward(x, params, reqfeature=False, isgen=True)
    jax.block_until_ready(logits)

    ref = _reference(x, params)
    assert logits.shape == (B, NUM_CLASSES + 1, H, W), logits.shape
    # tolerance deliberately loosened for bf16 matmul inputs (f32 accumulation,
    # f32 error path); |logits| is O(30), bf16 rounding contributes O(0.1-0.3).
    assert jnp.allclose(logits, ref, atol=0.5, rtol=0.05), (
        float(jnp.max(jnp.abs(logits - ref))))

    # exercise the HW >= 128 regime (lane axis already dense, batch on the grid)
    H2 = W2 = 16
    x2 = jax.random.normal(k_x2, (B, C, H2, W2), jnp.float32)
    _, logits2 = csgrl_model_forward(x2, params, reqfeature=False, isgen=True)
    jax.block_until_ready(logits2)
    ref2 = _reference(x2, params)
    assert logits2.shape == (B, NUM_CLASSES + 1, H2, W2), logits2.shape
    assert jnp.allclose(logits2, ref2, atol=0.5, rtol=0.05), (
        float(jnp.max(jnp.abs(logits2 - ref2))))

    print("KERNEL_OK")
</pallas_src>

<mosaic_0001>
module attributes {stable_mosaic.version = 11 : i64} {
  func.func @kernel(%arg0: i32, %arg1: memref<32x128xbf16, #tpu.memory_space<vmem>>, %arg2: memref<80x32xbf16, #tpu.memory_space<vmem>>, %arg3: memref<40x80xbf16, #tpu.memory_space<vmem>>, %arg4: memref<80x40xbf16, #tpu.memory_space<vmem>>, %arg5: memref<160x80xbf16, #tpu.memory_space<vmem>>, %arg6: memref<5x160xf32, #tpu.memory_space<vmem>>, %arg7: memref<5x128xf32, #tpu.memory_space<vmem>>) attributes {dimension_semantics = [#tpu.dimension_semantics<parallel>], iteration_bounds = array<i64: 1>, scalar_prefetch = 0 : i64, scratch_operands = 0 : i64, tpu.core_type = #tpu.core_type<tc>, window_params = [{transform_indices = @transform_0, window_bounds = array<i64: 32, 128>}, {pipeline_mode = #tpu.pipeline_mode<synchronous>, transform_indices = @transform_1, window_bounds = array<i64: 80, 32>}, {pipeline_mode = #tpu.pipeline_mode<synchronous>, transform_indices = @transform_2, window_bounds = array<i64: 40, 80>}, {pipeline_mode = #tpu.pipeline_mode<synchronous>, transform_indices = @transform_3, window_bounds = array<i64: 80, 40>}, {pipeline_mode = #tpu.pipeline_mode<synchronous>, transform_indices = @transform_4, window_bounds = array<i64: 160, 80>}, {pipeline_mode = #tpu.pipeline_mode<synchronous>, transform_indices = @transform_5, window_bounds = array<i64: 5, 160>}, {transform_indices = @transform_6, window_bounds = array<i64: 5, 128>}]} {
    %c0 = arith.constant 0 : index
    %c0_0 = arith.constant 0 : index
    %0 = vector.load %arg1[%c0, %c0_0] : memref<32x128xbf16, #tpu.memory_space<vmem>>, vector<32x128xbf16>
    %c0_1 = arith.constant 0 : index
    %c0_2 = arith.constant 0 : index
    %1 = vector.load %arg2[%c0_1, %c0_2] : memref<80x32xbf16, #tpu.memory_space<vmem>>, vector<80x32xbf16>
    %cst = arith.constant dense<0.000000e+00> : vector<80x128xf32>
    %2 = tpu.matmul %1, %0, %cst {dimension_numbers = #tpu.dot_dimension_numbers<[1], [0], [0], [1], [0, 0, 1, 1], [], []>} : vector<80x32xbf16>, vector<32x128xbf16>, vector<80x128xf32> -> vector<80x128xf32>
    %3 = math.tanh %2 : vector<80x128xf32>
    %4 = arith.truncf %3 : vector<80x128xf32> to vector<80x128xbf16>
    %c0_3 = arith.constant 0 : index
    %c0_4 = arith.constant 0 : index
    %5 = vector.load %arg3[%c0_3, %c0_4] : memref<40x80xbf16, #tpu.memory_space<vmem>>, vector<40x80xbf16>
    %cst_5 = arith.constant dense<0.000000e+00> : vector<40x128xf32>
    %6 = tpu.matmul %5, %4, %cst_5 {dimension_numbers = #tpu.dot_dimension_numbers<[1], [0], [0], [1], [0, 0, 1, 1], [], []>} : vector<40x80xbf16>, vector<80x128xbf16>, vector<40x128xf32> -> vector<40x128xf32>
    %7 = math.tanh %6 : vector<40x128xf32>
    %8 = arith.truncf %7 : vector<40x128xf32> to vector<40x128xbf16>
    %c0_6 = arith.constant 0 : index
    %c0_7 = arith.constant 0 : index
    %9 = vector.load %arg4[%c0_6, %c0_7] : memref<80x40xbf16, #tpu.memory_space<vmem>>, vector<80x40xbf16>
    %cst_8 = arith.constant dense<0.000000e+00> : vector<80x128xf32>
    %10 = tpu.matmul %9, %8, %cst_8 {dimension_numbers = #tpu.dot_dimension_numbers<[1], [0], [0], [1], [0, 0, 1, 1], [], []>} : vector<80x40xbf16>, vector<40x128xbf16>, vector<80x128xf32> -> vector<80x128xf32>
    %11 = math.tanh %10 : vector<80x128xf32>
    %12 = arith.truncf %11 : vector<80x128xf32> to vector<80x128xbf16>
    %c0_9 = arith.constant 0 : index
    %c0_10 = arith.constant 0 : index
    %13 = vector.load %arg5[%c0_9, %c0_10] : memref<160x80xbf16, #tpu.memory_space<vmem>>, vector<160x80xbf16>
    %cst_11 = arith.constant dense<0.000000e+00> : vector<160x128xf32>
    %14 = tpu.matmul %13, %12, %cst_11 {dimension_numbers = #tpu.dot_dimension_numbers<[1], [0], [0], [1], [0, 0, 1, 1], [], []>} : vector<160x80xbf16>, vector<80x128xbf16>, vector<160x128xf32> -> vector<160x128xf32>
    %15 = arith.extf %0 : vector<32x128xbf16> to vector<32x128xf32>
    %16 = vector.shape_cast %14 : vector<160x128xf32> to vector<5x32x128xf32>
    %17 = vector.shape_cast %15 : vector<32x128xf32> to vector<1x32x128xf32>
    %18 = vector.broadcast %17 : vector<1x32x128xf32> to vector<5x32x128xf32>
    %19 = arith.subf %16, %18 : vector<5x32x128xf32>
    %20 = arith.mulf %19, %19 : vector<5x32x128xf32>
    %21 = vector.shape_cast %20 : vector<5x32x128xf32> to vector<160x128xf32>
    %c0_12 = arith.constant 0 : index
    %c0_13 = arith.constant 0 : index
    %22 = vector.load %arg6[%c0_12, %c0_13] : memref<5x160xf32, #tpu.memory_space<vmem>>, vector<5x160xf32>
    %cst_14 = arith.constant dense<0.000000e+00> : vector<5x128xf32>
    %23 = tpu.matmul %22, %21, %cst_14 {dimension_numbers = #tpu.dot_dimension_numbers<[1], [0], [0], [1], [0, 0, 1, 1], [], []>} : vector<5x160xf32>, vector<160x128xf32>, vector<5x128xf32> -> vector<5x128xf32>
    %cst_15 = arith.constant -1.000000e+02 : f32
    %cst_16 = arith.constant 1.000000e+02 : f32
    %24 = vector.broadcast %cst_15 : f32 to vector<5x128xf32>
    %25 = arith.maximumf %24, %23 : vector<5x128xf32>
    %26 = vector.broadcast %cst_16 : f32 to vector<5x128xf32>
    %27 = arith.minimumf %26, %25 : vector<5x128xf32>
    %c0_17 = arith.constant 0 : index
    %c0_18 = arith.constant 0 : index
    %28 = vector.load %arg7[%c0_17, %c0_18] : memref<5x128xf32, #tpu.memory_space<vmem>>, vector<5x128xf32>
    tpu.vector_store %arg7[%c0_17, %c0_18], %27 {strides = array<i32>} : memref<5x128xf32, #tpu.memory_space<vmem>>, vector<5x128xf32>,
    return
  }
  func.func @transform_0(%arg0: i32) -> (i32, i32) {
    %c0_i32 = arith.constant 0 : i32
    %c0_i32_0 = arith.constant 0 : i32
    return %c0_i32, %arg0 : i32, i32
  }
  func.func @transform_1(%arg0: i32) -> (i32, i32) {
    %c0_i32 = arith.constant 0 : i32
    %c0_i32_0 = arith.constant 0 : i32
    %c0_i32_1 = arith.constant 0 : i32
    return %c0_i32, %c0_i32_0 : i32, i32
  }
  func.func @transform_2(%arg0: i32) -> (i32, i32) {
    %c0_i32 = arith.constant 0 : i32
    %c0_i32_0 = arith.constant 0 : i32
    %c0_i32_1 = arith.constant 0 : i32
    return %c0_i32, %c0_i32_0 : i32, i32
  }
  func.func @transform_3(%arg0: i32) -> (i32, i32) {
    %c0_i32 = arith.constant 0 : i32
    %c0_i32_0 = arith.constant 0 : i32
    %c0_i32_1 = arith.constant 0 : i32
    return %c0_i32, %c0_i32_0 : i32, i32
  }
  func.func @transform_4(%arg0: i32) -> (i32, i32) {
    %c0_i32 = arith.constant 0 : i32
    %c0_i32_0 = arith.constant 0 : i32
    %c0_i32_1 = arith.constant 0 : i32
    return %c0_i32, %c0_i32_0 : i32, i32
  }
  func.func @transform_5(%arg0: i32) -> (i32, i32) {
    %c0_i32 = arith.constant 0 : i32
    %c0_i32_0 = arith.constant 0 : i32
    %c0_i32_1 = arith.constant 0 : i32
    return %c0_i32, %c0_i32_0 : i32, i32
  }
  func.func @transform_6(%arg0: i32) -> (i32, i32) {
    %c0_i32 = arith.constant 0 : i32
    %c0_i32_0 = arith.constant 0 : i32
    return %c0_i32, %arg0 : i32, i32
  }
}

</mosaic_0001>

<llo_original>
// kernel: tpu_custom_call.1
$region0: #{tpu_custom_call.1}
  #allocation0 [shape = 'u32[]', space=smem, size = 0x4, offset = 0x4, fixed_abs, tag = 'smem constant byte address 0x4 - core index']
  #allocation1 [shape = 'u32[144,128]{1,0:T(1,128)}', space=vmem, size = 0x12000, scoped, tag = 'internal scratch']
  %s0 = inlined_call_operand.vmem [shape: bf16[32,128], index: 0, kind: input, shape index: {}]
  %s1 = inlined_call_operand.vmem [shape: bf16[80,32], index: 1, kind: input, shape index: {}]
  %s2 = inlined_call_operand.vmem [shape: bf16[40,80], index: 2, kind: input, shape index: {}]
  %s3 = inlined_call_operand.vmem [shape: bf16[80,40], index: 3, kind: input, shape index: {}]
  %s4 = inlined_call_operand.vmem [shape: bf16[160,80], index: 4, kind: input, shape index: {}]
  %s5 = inlined_call_operand.hbm [shape: f32[5,160], index: 5, kind: input, shape index: {}]
  %s6 = inlined_call_operand.hbm [shape: f32[5,128], index: 6, kind: output, shape index: {}]
  %s7 = sld [smem:[#allocation0]]
  $region38: #{tpu_custom_call.1} parent=0
    _
  %s9 = ssub.s32 1, %s7
  %s10 = scalar_select 0, %s9, %s7
  $region1: #{tpu_custom_call.1} parent=0
    #allocation2 [shape = 'u8[8192]{0}', space=vmem, size = 0x2000, scoped, tag = 'input window, operand 5, single buffered']
    #allocation3 [shape = 's32[1]{0}', space=sflag, size = 0x4, scoped, tag = 'scoped memory for tpu_custom_call.1']
    #allocation4 [shape = 's32[1]{0}', space=sflag, size = 0x4, scoped, tag = 'scoped memory for tpu_custom_call.1']
    #allocation5 [shape = 'u8[4096]{0}', space=vmem, size = 0x1000, scoped, tag = 'output window, operand 0, single buffered']
    %11 = vsyncpa [#allocation3], 0
    %12 = vsyncpa [#allocation4], 0
    // Predicated region
    $region2: #{tpu_custom_call.1} parent=1 // pred_check
      _
    $region3: #{tpu_custom_call.1} parent=1 // pred_check_branch
      %14 = sbr.rel (0) target = $region5
    $region4: #{tpu_custom_call.1} parent=1 // pred_region
      _
    $region5: #{tpu_custom_call.1} parent=1 // pred_fallthru
      _
    // Predicated region
    $region6: #{tpu_custom_call.1} parent=1 // pred_check
      _
    $region7: #{tpu_custom_call.1} parent=1 // pred_check_branch
      %16 = sbr.rel (0) target = $region9
    $region8: #{tpu_custom_call.1} parent=1 // pred_region
      _
    $region9: #{tpu_custom_call.1} parent=1 // pred_fallthru
      _
    // Predicated region
    $region10: #{tpu_custom_call.1} parent=1 // pred_check
      _
    $region11: #{tpu_custom_call.1} parent=1 // pred_check_branch
      %18 = sbr.rel (0) target = $region13
    $region12: #{tpu_custom_call.1} parent=1 // pred_region
      _
    $region13: #{tpu_custom_call.1} parent=1 // pred_fallthru
      _
    // Predicated region
    $region14: #{tpu_custom_call.1} parent=1 // pred_check
      _
    $region15: #{tpu_custom_call.1} parent=1 // pred_check_branch
      %20 = sbr.rel (0) target = $region17
    $region16: #{tpu_custom_call.1} parent=1 // pred_region
      _
    $region17: #{tpu_custom_call.1} parent=1 // pred_fallthru
      _
    // Predicated region
    $region18: #{tpu_custom_call.1} parent=1 // pred_check
      _
    $region19: #{tpu_custom_call.1} parent=1 // pred_check_branch
      %22 = sbr.rel (0) target = $region21
    $region20: #{tpu_custom_call.1} parent=1 // pred_region
      _
    $region21: #{tpu_custom_call.1} parent=1 // pred_fallthru
      _
    // Predicated region
    $region22: #{tpu_custom_call.1} parent=1 // pred_check
      _
    $region23: #{tpu_custom_call.1} parent=1 // pred_check_branch
      %24 = sbr.rel (0) target = $region25
    $region24: #{tpu_custom_call.1} parent=1 // pred_region
      %s26 = ssub.s32 256, 256
      %27 = vsyncadd [#allocation3], %s26
      %s29 = sshll.u32 [#allocation2], 4
      %s30 = int_to_ptr.vmem [resolvable:$true] %s29
      %32 = dma.hbm_to_vmem [thread:$0]  %s5, 256, %s30, [#allocation3]
    $region25: #{tpu_custom_call.1} parent=1 // pred_fallthru
      _
    // Predicated region
    $region26: #{tpu_custom_call.1} parent=1 // pred_check
      _
    $region27: #{tpu_custom_call.1} parent=1 // pred_check_branch
      %34 = sbr.rel (0) target = $region29
    $region28: #{tpu_custom_call.1} parent=1 // pred_region
      %35 = dma.done [#allocation3], 256
    $region29: #{tpu_custom_call.1} parent=1 // pred_fallthru
      _
    %v37 = vld [vmem:[%s0] sm:$0xf]
    %v38 = vld [vmem:[%s0 + $0x4] sm:$0xf]
    %v39 = vld [vmem:[%s0 + $0x8] sm:$0xf]
    %v40 = vld [vmem:[%s0 + $0xc] sm:$0xf]
    %v41 = vld [vmem:[%s1] sm:$0xf]
    %v42 = vld [vmem:[%s1 + $0x4] sm:$0xf]
    %v43 = vld [vmem:[%s1 + $0x8] sm:$0xf]
    %v44 = vld [vmem:[%s1 + $0xc] sm:$0xf]
    %v45 = vld [vmem:[%s1 + $0x10] sm:$0xf]
    %v46 = vld [vmem:[%s1 + $0x14] sm:$0xf]
    %v47 = vld [vmem:[%s1 + $0x18] sm:$0xf]
    %v48 = vld [vmem:[%s1 + $0x1c] sm:$0xf]
    %v49 = vld [vmem:[%s1 + $0x20] sm:$0xf]
    %v50 = vld [vmem:[%s1 + $0x24] sm:$0xf]
    %v61 = vunpack.c.l.b16 %v41
    %v62 = vunpack.c.l.b16 %v42
    %v63 = vunpack.c.l.b16 %v43
    %v64 = vunpack.c.l.b16 %v44
    %v65 = vunpack.c.l.b16 %v45
    %v66 = vunpack.c.l.b16 %v46
    %v67 = vunpack.c.l.b16 %v47
    %v68 = vunpack.c.l.b16 %v48
    %v69 = vunpack.c.l.b16 %v49
    %v70 = vunpack.c.l.b16 %v50
    %v71 = vpack.c.b16 %v62, %v61
    %v72 = vpack.c.b16 %v64, %v63
    %v73 = vpack.c.b16 %v66, %v65
    %v74 = vpack.c.b16 %v68, %v67
    %v75 = vpack.c.b16 %v70, %v69
    %v80 = vunpack.c.l.b16 %v37
    %v81 = vunpack.c.l.b16 %v38
    %v82 = vunpack.c.l.b16 %v39
    %v83 = vunpack.c.l.b16 %v40
    %v84 = vpack.c.b16 %v81, %v80
    %v85 = vpack.c.b16 %v83, %v82
    %vm88 = vcmask 261120
    %v90 = vsel %vm88, %v71, 0
    %v93 = vsel %vm88, %v72, 0
    %v96 = vsel %vm88, %v73, 0
    %v99 = vsel %vm88, %v74, 0
    %v102 = vsel %vm88, %v75, 0
    %104 = vmatprep.subr.bf16.mxu0 0
    %105 = vmatpush1.bf16.msra.mxu0 0
    %106 = vmatprep.subr.bf16.mxu0 0
    %107 = vmatpush1.bf16.msra.mxu0 0
    %108 = vmatprep.subr.bf16.mxu0 0
    %109 = vmatpush1.bf16.msra.mxu0 0
    %110 = vmatprep.subr.bf16.mxu0 0
    %111 = vmatpush1.bf16.msra.mxu0 0
    %112 = vmatprep.subr.bf16.mxu0 0
    %113 = vmatpush1.bf16.msra.mxu0 0
    %114 = vmatprep.subr.bf16.mxu0 0
    %115 = vmatpush1.bf16.msra.mxu0 0
    %116 = vmatprep.subr.bf16.mxu0 0
    %117 = vmatpush1.bf16.msra.mxu0 %v85
    %118 = vmatprep.subr.bf16.mxu0 0
    %119 = vmatpush1.bf16.msra.mxu0 %v84
    %120 = vmatprep.subr.bf16.mxu0 0
    %121 = vmatpush2.bf16.msra.mxu0 0
    %122 = vmatprep.subr.bf16.mxu0 0
    %123 = vmatpush2.bf16.msra.mxu0 0
    %124 = vmatprep.subr.bf16.mxu0 0
    %125 = vmatpush2.bf16.msra.mxu0 0
    %126 = vmatprep.subr.bf16.mxu0 0
    %127 = vmatpush2.bf16.msra.mxu0 0
    %128 = vmatprep.subr.bf16.mxu0 0
    %129 = vmatpush2.bf16.msra.mxu0 0
    %130 = vmatprep.subr.bf16.mxu0 0
    %131 = vmatpush2.bf16.msra.mxu0 0
    %132 = vmatprep.subr.bf16.mxu0 0
    %133 = vmatpush2.bf16.msra.mxu0 0
    %134 = vmatprep.subr.bf16.mxu0 0
    %135 = vmatpush2.bf16.msra.mxu0 0
    %136 = vmatprep.mubr.bf16.mxu0 0
    %137 = vmatmul.mubr.bf16.gmra.mxu0 %v90
    %v138 = vpop.f32.mrf.mxu0
    %v139 = vadd.f32 0.0, %v138
    %v140 = vpop.f32.mrf.mxu0
    %v141 = vpop.f32.mrf.mxu0
    %v142 = vadd.f32 0.0, %v141
    %v143 = vpop.f32.mrf.mxu0
    %144 = vmatprep.mubr.bf16.mxu0 0
    %145 = vmatmul.mubr.bf16.gmra.mxu0 %v93
    %v146 = vpop.f32.mrf.mxu0
    %v147 = vadd.f32 0.0, %v146
    %v148 = vpop.f32.mrf.mxu0
    %v149 = vpop.f32.mrf.mxu0
    %v150 = vadd.f32 0.0, %v149
    %v151 = vpop.f32.mrf.mxu0
    %152 = vmatprep.mubr.bf16.mxu0 0
    %153 = vmatmul.mubr.bf16.gmra.mxu0 %v96
    %v154 = vpop.f32.mrf.mxu0
    %v155 = vadd.f32 0.0, %v154
    %v156 = vpop.f32.mrf.mxu0
    %v157 = vpop.f32.mrf.mxu0
    %v158 = vadd.f32 0.0, %v157
    %v159 = vpop.f32.mrf.mxu0
    %160 = vmatprep.mubr.bf16.mxu0 0
    %161 = vmatmul.mubr.bf16.gmra.mxu0 %v99
    %v162 = vpop.f32.mrf.mxu0
    %v163 = vadd.f32 0.0, %v162
    %v164 = vpop.f32.mrf.mxu0
    %v165 = vpop.f32.mrf.mxu0
    %v166 = vadd.f32 0.0, %v165
    %v167 = vpop.f32.mrf.mxu0
    %168 = vmatprep.mubr.bf16.mxu0 0
    %169 = vmatmul.mubr.bf16.gmra.mxu0 %v102
    %v170 = vpop.f32.mrf.mxu0
    %v171 = vadd.f32 0.0, %v170
    %v172 = vpop.f32.mrf.mxu0
    %v173 = vpop.f32.mrf.mxu0
    %v174 = vadd.f32 0.0, %v173
    %v175 = vpop.f32.mrf.mxu0
    %176 = vdwg.mxu0
    %v177 = vtanh.pop %v139
    %v178 = vtanh.pop %v142
    %v179 = vtanh.pop %v147
    %v180 = vtanh.pop %v150
    %v181 = vtanh.pop %v155
    %v182 = vtanh.pop %v158
    %v183 = vtanh.pop %v163
    %v184 = vtanh.pop %v166
    %v185 = vtanh.pop %v171
    %v186 = vtanh.pop %v174
    %v187 = vpack.c.bf16 %v178, %v177
    %v188 = vpack.c.bf16 %v180, %v179
    %v189 = vpack.c.bf16 %v182, %v181
    %v190 = vpack.c.bf16 %v184, %v183
    %v191 = vpack.c.bf16 %v186, %v185
    %v192 = vld [vmem:[%s2] sm:$0xf]
    %v193 = vld [vmem:[%s2 + $0x4] sm:$0xf]
    %v194 = vld [vmem:[%s2 + $0x8] sm:$0xf]
    %v195 = vld [vmem:[%s2 + $0xc] sm:$0xf]
    %v196 = vld [vmem:[%s2 + $0x10] sm:$0xf]
    %v202 = vunpack.c.l.b16 %v192
    %v203 = vunpack.c.l.b16 %v193
    %v204 = vunpack.c.l.b16 %v194
    %v205 = vunpack.c.l.b16 %v195
    %v206 = vunpack.c.l.b16 %v196
    %v207 = vpack.c.b16 %v203, %v202
    %v208 = vpack.c.b16 %v205, %v204
    %v209 = vpack.c.b16 %v206, %v206
    %vm210 = vcmask 654336
    %v212 = vsel %vm210, %v207, 0
    %v215 = vsel %vm210, %v208, 0
    %v218 = vsel %vm210, %v209, 0
    %220 = vmatprep.subr.bf16.mxu0 0
    %221 = vmatpush1.bf16.msra.mxu0 0
    %222 = vmatprep.subr.bf16.mxu0 0
    %223 = vmatpush1.bf16.msra.mxu0 0
    %224 = vmatprep.subr.bf16.mxu0 0
    %225 = vmatpush1.bf16.msra.mxu0 0
    %226 = vmatprep.subr.bf16.mxu0 0
    %227 = vmatpush1.bf16.msra.mxu0 %v191
    %228 = vmatprep.subr.bf16.mxu0 0
    %229 = vmatpush1.bf16.msra.mxu0 %v190
    %230 = vmatprep.subr.bf16.mxu0 0
    %231 = vmatpush1.bf16.msra.mxu0 %v189
    %232 = vmatprep.subr.bf16.mxu0 0
    %233 = vmatpush1.bf16.msra.mxu0 %v188
    %234 = vmatprep.subr.bf16.mxu0 0
    %235 = vmatpush1.bf16.msra.mxu0 %v187
    %236 = vmatprep.subr.bf16.mxu0 0
    %237 = vmatpush2.bf16.msra.mxu0 0
    %238 = vmatprep.subr.bf16.mxu0 0
    %239 = vmatpush2.bf16.msra.mxu0 0
    %240 = vmatprep.subr.bf16.mxu0 0
    %241 = vmatpush2.bf16.msra.mxu0 0
    %242 = vmatprep.subr.bf16.mxu0 0
    %243 = vmatpush2.bf16.msra.mxu0 0
    %244 = vmatprep.subr.bf16.mxu0 0
    %245 = vmatpush2.bf16.msra.mxu0 0
    %246 = vmatprep.subr.bf16.mxu0 0
    %247 = vmatpush2.bf16.msra.mxu0 0
    %248 = vmatprep.subr.bf16.mxu0 0
    %249 = vmatpush2.bf16.msra.mxu0 0
    %250 = vmatprep.subr.bf16.mxu0 0
    %251 = vmatpush2.bf16.msra.mxu0 0
    %252 = vmatprep.mubr.bf16.mxu0 0
    %253 = vmatmul.mubr.bf16.gmra.mxu0 %v212
    %v254 = vpop.f32.mrf.mxu0
    %v255 = vadd.f32 0.0, %v254
    %v256 = vpop.f32.mrf.mxu0
    %v257 = vpop.f32.mrf.mxu0
    %v258 = vadd.f32 0.0, %v257
    %v259 = vpop.f32.mrf.mxu0
    %260 = vmatprep.mubr.bf16.mxu0 0
    %261 = vmatmul.mubr.bf16.gmra.mxu0 %v215
    %v262 = vpop.f32.mrf.mxu0
    %v263 = vadd.f32 0.0, %v262
    %v264 = vpop.f32.mrf.mxu0
    %v265 = vpop.f32.mrf.mxu0
    %v266 = vadd.f32 0.0, %v265
    %v267 = vpop.f32.mrf.mxu0
    %268 = vmatprep.mubr.bf16.mxu0 0
    %269 = vmatmul.mubr.bf16.gmra.mxu0 %v218
    %v270 = vpop.f32.mrf.mxu0
    %v271 = vadd.f32 0.0, %v270
    %v272 = vpop.f32.mrf.mxu0
    %v273 = vpop.f32.mrf.mxu0
    %v274 = vpop.f32.mrf.mxu0
    %275 = vdwg.mxu0
    %v276 = vtanh.pop %v255
    %v277 = vtanh.pop %v258
    %v278 = vtanh.pop %v263
    %v279 = vtanh.pop %v266
    %v280 = vtanh.pop %v271
    %v281 = vpack.c.bf16 %v277, %v276
    %v282 = vpack.c.bf16 %v279, %v278
    %v283 = vpack.c.bf16 %v280, %v280
    %v284 = vld [vmem:[%s3] sm:$0xf]
    %v285 = vld [vmem:[%s3 + $0x4] sm:$0xf]
    %v286 = vld [vmem:[%s3 + $0x8] sm:$0xf]
    %v287 = vld [vmem:[%s3 + $0xc] sm:$0xf]
    %v288 = vld [vmem:[%s3 + $0x10] sm:$0xf]
    %v289 = vld [vmem:[%s3 + $0x14] sm:$0xf]
    %v290 = vld [vmem:[%s3 + $0x18] sm:$0xf]
    %v291 = vld [vmem:[%s3 + $0x1c] sm:$0xf]
    %v292 = vld [vmem:[%s3 + $0x20] sm:$0xf]
    %v293 = vld [vmem:[%s3 + $0x24] sm:$0xf]
    %v304 = vunpack.c.l.b16 %v284
    %v305 = vunpack.c.l.b16 %v285
    %v306 = vunpack.c.l.b16 %v286
    %v307 = vunpack.c.l.b16 %v287
    %v308 = vunpack.c.l.b16 %v288
    %v309 = vunpack.c.l.b16 %v289
    %v310 = vunpack.c.l.b16 %v290
    %v311 = vunpack.c.l.b16 %v291
    %v312 = vunpack.c.l.b16 %v292
    %v313 = vunpack.c.l.b16 %v293
    %v314 = vpack.c.b16 %v305, %v304
    %v315 = vpack.c.b16 %v307, %v306
    %v316 = vpack.c.b16 %v309, %v308
    %v317 = vpack.c.b16 %v311, %v310
    %v318 = vpack.c.b16 %v313, %v312
    %vm319 = vcmask 326656
    %v321 = vsel %vm319, %v314, 0
    %v324 = vsel %vm319, %v315, 0
    %v327 = vsel %vm319, %v316, 0
    %v330 = vsel %vm319, %v317, 0
    %v333 = vsel %vm319, %v318, 0
    %vm335 = vcmask 1043456
    %v337 = vsel %vm335, %v283, 0
    %339 = vmatprep.subr.bf16.mxu0 0
    %340 = vmatpush1.bf16.msra.mxu0 0
    %341 = vmatprep.subr.bf16.mxu0 0
    %342 = vmatpush1.bf16.msra.mxu0 0
    %343 = vmatprep.subr.bf16.mxu0 0
    %344 = vmatpush1.bf16.msra.mxu0 0
    %345 = vmatprep.subr.bf16.mxu0 0
    %346 = vmatpush1.bf16.msra.mxu0 0
    %347 = vmatprep.subr.bf16.mxu0 0
    %348 = vmatpush1.bf16.msra.mxu0 0
    %349 = vmatprep.subr.bf16.mxu0 0
    %350 = vmatpush1.bf16.msra.mxu0 %v337
    %351 = vmatprep.subr.bf16.mxu0 0
    %352 = vmatpush1.bf16.msra.mxu0 %v282
    %353 = vmatprep.subr.bf16.mxu0 0
    %354 = vmatpush1.bf16.msra.mxu0 %v281
    %355 = vmatprep.subr.bf16.mxu0 0
    %356 = vmatpush2.bf16.msra.mxu0 0
    %357 = vmatprep.subr.bf16.mxu0 0
    %358 = vmatpush2.bf16.msra.mxu0 0
    %359 = vmatprep.subr.bf16.mxu0 0
    %360 = vmatpush2.bf16.msra.mxu0 0
    %361 = vmatprep.subr.bf16.mxu0 0
    %362 = vmatpush2.bf16.msra.mxu0 0
    %363 = vmatprep.subr.bf16.mxu0 0
    %364 = vmatpush2.bf16.msra.mxu0 0
    %365 = vmatprep.subr.bf16.mxu0 0
    %366 = vmatpush2.bf16.msra.mxu0 0
    %367 = vmatprep.subr.bf16.mxu0 0
    %368 = vmatpush2.bf16.msra.mxu0 0
    %369 = vmatprep.subr.bf16.mxu0 0
    %370 = vmatpush2.bf16.msra.mxu0 0
    %371 = vmatprep.mubr.bf16.mxu0 0
    %372 = vmatmul.mubr.bf16.gmra.mxu0 %v321
    %v373 = vpop.f32.mrf.mxu0
    %v374 = vadd.f32 0.0, %v373
    %v375 = vpop.f32.mrf.mxu0
    %v376 = vpop.f32.mrf.mxu0
    %v377 = vadd.f32 0.0, %v376
    %v378 = vpop.f32.mrf.mxu0
    %379 = vmatprep.mubr.bf16.mxu0 0
    %380 = vmatmul.mubr.bf16.gmra.mxu0 %v324
    %v381 = vpop.f32.mrf.mxu0
    %v382 = vadd.f32 0.0, %v381
    %v383 = vpop.f32.mrf.mxu0
    %v384 = vpop.f32.mrf.mxu0
    %v385 = vadd.f32 0.0, %v384
    %v386 = vpop.f32.mrf.mxu0
    %387 = vmatprep.mubr.bf16.mxu0 0
    %388 = vmatmul.mubr.bf16.gmra.mxu0 %v327
    %v389 = vpop.f32.mrf.mxu0
    %v390 = vadd.f32 0.0, %v389
    %v391 = vpop.f32.mrf.mxu0
    %v392 = vpop.f32.mrf.mxu0
    %v393 = vadd.f32 0.0, %v392
    %v394 = vpop.f32.mrf.mxu0
    %395 = vmatprep.mubr.bf16.mxu0 0
    %396 = vmatmul.mubr.bf16.gmra.mxu0 %v330
    %v397 = vpop.f32.mrf.mxu0
    %v398 = vadd.f32 0.0, %v397
    %v399 = vpop.f32.mrf.mxu0
    %v400 = vpop.f32.mrf.mxu0
    %v401 = vadd.f32 0.0, %v400
    %v402 = vpop.f32.mrf.mxu0
    %403 = vmatprep.mubr.bf16.mxu0 0
    %404 = vmatmul.mubr.bf16.gmra.mxu0 %v333
    %v405 = vpop.f32.mrf.mxu0
    %v406 = vadd.f32 0.0, %v405
    %v407 = vpop.f32.mrf.mxu0
    %v408 = vpop.f32.mrf.mxu0
    %v409 = vadd.f32 0.0, %v408
    %v410 = vpop.f32.mrf.mxu0
    %411 = vdwg.mxu0
    %v412 = vtanh.pop %v374
    %v413 = vtanh.pop %v377
    %v414 = vtanh.pop %v382
    %v415 = vtanh.pop %v385
    %v416 = vtanh.pop %v390
    %v417 = vtanh.pop %v393
    %v418 = vtanh.pop %v398
    %v419 = vtanh.pop %v401
    %v420 = vtanh.pop %v406
    %v421 = vtanh.pop %v409
    %v422 = vpack.c.bf16 %v413, %v412
    %v423 = vpack.c.bf16 %v415, %v414
    %v424 = vpack.c.bf16 %v417, %v416
    %v425 = vpack.c.bf16 %v419, %v418
    %v426 = vpack.c.bf16 %v421, %v420
    %v427 = vld [vmem:[%s4] sm:$0xf]
    %v428 = vld [vmem:[%s4 + $0x4] sm:$0xf]
    %v429 = vld [vmem:[%s4 + $0x8] sm:$0xf]
    %v430 = vld [vmem:[%s4 + $0xc] sm:$0xf]
    %v431 = vld [vmem:[%s4 + $0x10] sm:$0xf]
    %v432 = vld [vmem:[%s4 + $0x14] sm:$0xf]
    %v433 = vld [vmem:[%s4 + $0x18] sm:$0xf]
    %v434 = vld [vmem:[%s4 + $0x1c] sm:$0xf]
    %v435 = vld [vmem:[%s4 + $0x20] sm:$0xf]
    %v436 = vld [vmem:[%s4 + $0x24] sm:$0xf]
    %v437 = vld [vmem:[%s4 + $0x28] sm:$0xf]
    %v438 = vld [vmem:[%s4 + $0x2c] sm:$0xf]
    %v439 = vld [vmem:[%s4 + $0x30] sm:$0xf]
    %v440 = vld [vmem:[%s4 + $0x34] sm:$0xf]
    %v441 = vld [vmem:[%s4 + $0x38] sm:$0xf]
    %v442 = vld [vmem:[%s4 + $0x3c] sm:$0xf]
    %v443 = vld [vmem:[%s4 + $0x40] sm:$0xf]
    %v444 = vld [vmem:[%s4 + $0x44] sm:$0xf]
    %v445 = vld [vmem:[%s4 + $0x48] sm:$0xf]
    %v446 = vld [vmem:[%s4 + $0x4c] sm:$0xf]
    %v467 = vunpack.c.l.b16 %v427
    %v468 = vunpack.c.l.b16 %v428
    %v469 = vunpack.c.l.b16 %v429
    %v470 = vunpack.c.l.b16 %v430
    %v471 = vunpack.c.l.b16 %v431
    %v472 = vunpack.c.l.b16 %v432
    %v473 = vunpack.c.l.b16 %v433
    %v474 = vunpack.c.l.b16 %v434
    %v475 = vunpack.c.l.b16 %v435
    %v476 = vunpack.c.l.b16 %v436
    %v477 = vunpack.c.l.b16 %v437
    %v478 = vunpack.c.l.b16 %v438
    %v479 = vunpack.c.l.b16 %v439
    %v480 = vunpack.c.l.b16 %v440
    %v481 = vunpack.c.l.b16 %v441
    %v482 = vunpack.c.l.b16 %v442
    %v483 = vunpack.c.l.b16 %v443
    %v484 = vunpack.c.l.b16 %v444
    %v485 = vunpack.c.l.b16 %v445
    %v486 = vunpack.c.l.b16 %v446
    %v487 = vpack.c.b16 %v468, %v467
    %v488 = vpack.c.b16 %v470, %v469
    %v489 = vpack.c.b16 %v472, %v471
    %v490 = vpack.c.b16 %v474, %v473
    %v491 = vpack.c.b16 %v476, %v475
    %v492 = vpack.c.b16 %v478, %v477
    %v493 = vpack.c.b16 %v480, %v479
    %v494 = vpack.c.b16 %v482, %v481
    %v495 = vpack.c.b16 %v484, %v483
    %v496 = vpack.c.b16 %v486, %v485
    %v498 = vsel %vm210, %v487, 0
    %v501 = vsel %vm210, %v488, 0
    %v504 = vsel %vm210, %v489, 0
    %v507 = vsel %vm210, %v490, 0
    %v510 = vsel %vm210, %v491, 0
    %v513 = vsel %vm210, %v492, 0
    %v516 = vsel %vm210, %v493, 0
    %v519 = vsel %vm210, %v494, 0
    %v522 = vsel %vm210, %v495, 0
    %v525 = vsel %vm210, %v496, 0
    %527 = vmatprep.subr.bf16.mxu0 0
    %528 = vmatpush1.bf16.msra.mxu0 0
    %529 = vmatprep.subr.bf16.mxu0 0
    %530 = vmatpush1.bf16.msra.mxu0 0
    %531 = vmatprep.subr.bf16.mxu0 0
    %532 = vmatpush1.bf16.msra.mxu0 0
    %533 = vmatprep.subr.bf16.mxu0 0
    %534 = vmatpush1.bf16.msra.mxu0 %v426
    %535 = vmatprep.subr.bf16.mxu0 0
    %536 = vmatpush1.bf16.msra.mxu0 %v425
    %537 = vmatprep.subr.bf16.mxu0 0
    %538 = vmatpush1.bf16.msra.mxu0 %v424
    %539 = vmatprep.subr.bf16.mxu0 0
    %540 = vmatpush1.bf16.msra.mxu0 %v423
    %541 = vmatprep.subr.bf16.mxu0 0
    %542 = vmatpush1.bf16.msra.mxu0 %v422
    %543 = vmatprep.subr.bf16.mxu0 0
    %544 = vmatpush2.bf16.msra.mxu0 0
    %545 = vmatprep.subr.bf16.mxu0 0
    %546 = vmatpush2.bf16.msra.mxu0 0
    %547 = vmatprep.subr.bf16.mxu0 0
    %548 = vmatpush2.bf16.msra.mxu0 0
    %549 = vmatprep.subr.bf16.mxu0 0
    %550 = vmatpush2.bf16.msra.mxu0 0
    %551 = vmatprep.subr.bf16.mxu0 0
    %552 = vmatpush2.bf16.msra.mxu0 0
    %553 = vmatprep.subr.bf16.mxu0 0
    %554 = vmatpush2.bf16.msra.mxu0 0
    %555 = vmatprep.subr.bf16.mxu0 0
    %556 = vmatpush2.bf16.msra.mxu0 0
    %557 = vmatprep.subr.bf16.mxu0 0
    %558 = vmatpush2.bf16.msra.mxu0 0
    %559 = vmatprep.mubr.bf16.mxu0 0
    %560 = vmatmul.mubr.bf16.gmra.mxu0 %v498
    %v561 = vpop.f32.mrf.mxu0
    %v562 = vadd.f32 0.0, %v561
    %v563 = vpop.f32.mrf.mxu0
    %v564 = vpop.f32.mrf.mxu0
    %v565 = vadd.f32 0.0, %v564
    %v566 = vpop.f32.mrf.mxu0
    %567 = vmatprep.mubr.bf16.mxu0 0
    %568 = vmatmul.mubr.bf16.gmra.mxu0 %v501
    %v569 = vpop.f32.mrf.mxu0
    %v570 = vadd.f32 0.0, %v569
    %v571 = vpop.f32.mrf.mxu0
    %v572 = vpop.f32.mrf.mxu0
    %v573 = vadd.f32 0.0, %v572
    %v574 = vpop.f32.mrf.mxu0
    %575 = vmatprep.mubr.bf16.mxu0 0
    %576 = vmatmul.mubr.bf16.gmra.mxu0 %v504
    %v577 = vpop.f32.mrf.mxu0
    %v578 = vadd.f32 0.0, %v577
    %v579 = vpop.f32.mrf.mxu0
    %v580 = vpop.f32.mrf.mxu0
    %v581 = vadd.f32 0.0, %v580
    %v582 = vpop.f32.mrf.mxu0
    %583 = vmatprep.mubr.bf16.mxu0 0
    %584 = vmatmul.mubr.bf16.gmra.mxu0 %v507
    %v585 = vpop.f32.mrf.mxu0
    %v586 = vadd.f32 0.0, %v585
    %v587 = vpop.f32.mrf.mxu0
    %v588 = vpop.f32.mrf.mxu0
    %v589 = vadd.f32 0.0, %v588
    %v590 = vpop.f32.mrf.mxu0
    %591 = vmatprep.mubr.bf16.mxu0 0
    %592 = vmatmul.mubr.bf16.gmra.mxu0 %v510
    %v593 = vpop.f32.mrf.mxu0
    %v594 = vadd.f32 0.0, %v593
    %v595 = vpop.f32.mrf.mxu0
    %v596 = vpop.f32.mrf.mxu0
    %v597 = vadd.f32 0.0, %v596
    %v598 = vpop.f32.mrf.mxu0
    %599 = vmatprep.mubr.bf16.mxu0 0
    %600 = vmatmul.mubr.bf16.gmra.mxu0 %v513
    %v601 = vpop.f32.mrf.mxu0
    %v602 = vadd.f32 0.0, %v601
    %v603 = vpop.f32.mrf.mxu0
    %v604 = vpop.f32.mrf.mxu0
    %v605 = vadd.f32 0.0, %v604
    %v606 = vpop.f32.mrf.mxu0
    %607 = vmatprep.mubr.bf16.mxu0 0
    %608 = vmatmul.mubr.bf16.gmra.mxu0 %v516
    %v609 = vpop.f32.mrf.mxu0
    %v610 = vadd.f32 0.0, %v609
    %v611 = vpop.f32.mrf.mxu0
    %v612 = vpop.f32.mrf.mxu0
    %v613 = vadd.f32 0.0, %v612
    %v614 = vpop.f32.mrf.mxu0
    %615 = vmatprep.mubr.bf16.mxu0 0
    %616 = vmatmul.mubr.bf16.gmra.mxu0 %v519
    %v617 = vpop.f32.mrf.mxu0
    %v618 = vadd.f32 0.0, %v617
    %v619 = vpop.f32.mrf.mxu0
    %v620 = vpop.f32.mrf.mxu0
    %v621 = vadd.f32 0.0, %v620
    %v622 = vpop.f32.mrf.mxu0
    %623 = vmatprep.mubr.bf16.mxu0 0
    %624 = vmatmul.mubr.bf16.gmra.mxu0 %v522
    %v625 = vpop.f32.mrf.mxu0
    %v626 = vadd.f32 0.0, %v625
    %v627 = vpop.f32.mrf.mxu0
    %v628 = vpop.f32.mrf.mxu0
    %v629 = vadd.f32 0.0, %v628
    %v630 = vpop.f32.mrf.mxu0
    %631 = vmatprep.mubr.bf16.mxu0 0
    %632 = vmatmul.mubr.bf16.gmra.mxu0 %v525
    %v633 = vpop.f32.mrf.mxu0
    %v634 = vadd.f32 0.0, %v633
    %v635 = vpop.f32.mrf.mxu0
    %v636 = vpop.f32.mrf.mxu0
    %v637 = vadd.f32 0.0, %v636
    %v638 = vpop.f32.mrf.mxu0
    %639 = vdwg.mxu0
    %v640 = vunpack.c.l.bf16 %v37
    %v641 = vunpack.c.l.bf16 %v38
    %v642 = vunpack.c.l.bf16 %v39
    %v643 = vunpack.c.l.bf16 %v40
    %v644 = vsub.f32 %v562, %v640
    %v645 = vsub.f32 %v565, %v641
    %v646 = vsub.f32 %v570, %v642
    %v647 = vsub.f32 %v573, %v643
    %v648 = vsub.f32 %v578, %v640
    %v649 = vsub.f32 %v581, %v641
    %v650 = vsub.f32 %v586, %v642
    %v651 = vsub.f32 %v589, %v643
    %v652 = vsub.f32 %v594, %v640
    %v653 = vsub.f32 %v597, %v641
    %v654 = vsub.f32 %v602, %v642
    %v655 = vsub.f32 %v605, %v643
    %v656 = vsub.f32 %v610, %v640
    %v657 = vsub.f32 %v613, %v641
    %v658 = vsub.f32 %v618, %v642
    %v659 = vsub.f32 %v621, %v643
    %v660 = vsub.f32 %v626, %v640
    %v661 = vsub.f32 %v629, %v641
    %v662 = vsub.f32 %v634, %v642
    %v663 = vsub.f32 %v637, %v643
    %v664 = vmul.f32 %v644, %v644
    %v665 = vmul.f32 %v645, %v645
    %v666 = vmul.f32 %v646, %v646
    %v667 = vmul.f32 %v647, %v647
    %v668 = vmul.f32 %v648, %v648
    %v669 = vmul.f32 %v649, %v649
    %v670 = vmul.f32 %v650, %v650
    %v671 = vmul.f32 %v651, %v651
    %v672 = vmul.f32 %v652, %v652
    %v673 = vmul.f32 %v653, %v653
    %v674 = vmul.f32 %v654, %v654
    %v675 = vmul.f32 %v655, %v655
    %v676 = vmul.f32 %v656, %v656
    %v677 = vmul.f32 %v657, %v657
    %v678 = vmul.f32 %v658, %v658
    %v679 = vmul.f32 %v659, %v659
    %v680 = vmul.f32 %v660, %v660
    %v681 = vmul.f32 %v661, %v661
    %v682 = vmul.f32 %v662, %v662
    %v683 = vmul.f32 %v663, %v663
    %v684 = vld [vmem:[#allocation2] sm:$0x1f]
    %v685 = vld [vmem:[#allocation2 + $0x8] sm:$0x1f]
    %v687 = vsel %vm88, %v685, 0
    %689 = vmatprep.subr.mxu0 0.0
    %690 = vmatpush1.msra.mxu0 %v679
    %691 = vmatprep.subr.mxu0 0.0
    %692 = vmatpush1.msra.mxu0 %v678
    %693 = vmatprep.subr.mxu0 0.0
    %694 = vmatpush1.msra.mxu0 %v677
    %695 = vmatprep.subr.mxu0 0.0
    %696 = vmatpush1.msra.mxu0 %v676
    %697 = vmatprep.subr.mxu0 0.0
    %698 = vmatpush1.msra.mxu0 %v675
    %699 = vmatprep.subr.mxu0 0.0
    %700 = vmatpush1.msra.mxu0 %v674
    %701 = vmatprep.subr.mxu0 0.0
    %702 = vmatpush1.msra.mxu0 %v673
    %703 = vmatprep.subr.mxu0 0.0
    %704 = vmatpush1.msra.mxu0 %v672
    %705 = vmatprep.subr.mxu0 0.0
    %706 = vmatpush1.msra.mxu0 %v671
    %707 = vmatprep.subr.mxu0 0.0
    %708 = vmatpush1.msra.mxu0 %v670
    %709 = vmatprep.subr.mxu0 0.0
    %710 = vmatpush1.msra.mxu0 %v669
    %711 = vmatprep.subr.mxu0 0.0
    %712 = vmatpush1.msra.mxu0 %v668
    %713 = vmatprep.subr.mxu0 0.0
    %714 = vmatpush1.msra.mxu0 %v667
    %715 = vmatprep.subr.mxu0 0.0
    %716 = vmatpush1.msra.mxu0 %v666
    %717 = vmatprep.subr.mxu0 0.0
    %718 = vmatpush1.msra.mxu0 %v665
    %719 = vmatprep.subr.mxu0 0.0
    %720 = vmatpush1.msra.mxu0 %v664
    %721 = vmatprep.subr.mxu0 0.0
    %722 = vmatpush2.msra.mxu0 0.0
    %723 = vmatprep.subr.mxu0 0.0
    %724 = vmatpush2.msra.mxu0 0.0
    %725 = vmatprep.subr.mxu0 0.0
    %726 = vmatpush2.msra.mxu0 0.0
    %727 = vmatprep.subr.mxu0 0.0
    %728 = vmatpush2.msra.mxu0 0.0
    %729 = vmatprep.subr.mxu0 0.0
    %730 = vmatpush2.msra.mxu0 0.0
    %731 = vmatprep.subr.mxu0 0.0
    %732 = vmatpush2.msra.mxu0 0.0
    %733 = vmatprep.subr.mxu0 0.0
    %734 = vmatpush2.msra.mxu0 0.0
    %735 = vmatprep.subr.mxu0 0.0
    %736 = vmatpush2.msra.mxu0 0.0
    %737 = vmatprep.subr.mxu0 0.0
    %738 = vmatpush2.msra.mxu0 0.0
    %739 = vmatprep.subr.mxu0 0.0
    %740 = vmatpush2.msra.mxu0 0.0
    %741 = vmatprep.subr.mxu0 0.0
    %742 = vmatpush2.msra.mxu0 0.0
    %743 = vmatprep.subr.mxu0 0.0
    %744 = vmatpush2.msra.mxu0 0.0
    %745 = vmatprep.subr.mxu0 0.0
    %746 = vmatpush2.msra.mxu0 %v683
    %747 = vmatprep.subr.mxu0 0.0
    %748 = vmatpush2.msra.mxu0 %v682
    %749 = vmatprep.subr.mxu0 0.0
    %750 = vmatpush2.msra.mxu0 %v681
    %751 = vmatprep.subr.mxu0 0.0
    %752 = vmatpush2.msra.mxu0 %v680
    %753 = vmatprep.mubr.f32.mxu0 %v687
    %754 = vmatmul.mubr.f32.gmra.mxu0 %v684
    %v755 = vpop.f32.mrf.mxu0
    %v756 = vadd.f32 0.0, %v755
    %v757 = vpop.f32.mrf.mxu0
    %758 = vdwg.mxu0
    %v759 = vmax.f32 %v756, -100.0
    %v760 = vmin.f32 %v759, 100.0
    %761 = vst [vmem:[#allocation5] sm:$0x1f] %v760
    // Predicated region
    $region30: #{tpu_custom_call.1} parent=1 // pred_check
      _
    $region31: #{tpu_custom_call.1} parent=1 // pred_check_branch
      %763 = sbr.rel (0) target = $region33
    $region32: #{tpu_custom_call.1} parent=1 // pred_region
      %s765 = ssub.s32 128, 128
      %766 = vsyncadd [#allocation4], %s765
      %s768 = sshll.u32 [#allocation5], 4
      %s769 = int_to_ptr.vmem [resolvable:$true] %s768
      %771 = dma.vmem_to_hbm [thread:$0]  %s769, 128, %s6, [#allocation4]
    $region33: #{tpu_custom_call.1} parent=1 // pred_fallthru
      _
    // Predicated region
    $region34: #{tpu_custom_call.1} parent=1 // pred_check
      _
    $region35: #{tpu_custom_call.1} parent=1 // pred_check_branch
      %773 = sbr.rel (0) target = $region37
    $region36: #{tpu_custom_call.1} parent=1 // pred_region
      %774 = dma.done [#allocation4], 128
    $region37: #{tpu_custom_call.1} parent=1 // pred_fallthru
      _
    %775 = vsyncpa [#allocation3], 1
    %776 = vsyncpa [#allocation4], 1

</llo_original>
